<compile_context>
chip_gen: v7x
topology: tpu7x:2x2x1
jax: 0.10.0
libtpu: 0.0.40
codegen_flags: <defaults>
</compile_context>

<pallas_src>
import jax
import jax.numpy as jnp
from jax.experimental import pallas as pl
from jax.experimental.pallas import tpu as pltpu

_LANE = 128
_SUBLANE = 8
_PALLAS_MIN_BYTES = 1 << 20  # below ~1 MiB, plain XLA broadcast is strictly better


def _round_up(x: int, m: int) -> int:
    return ((x + m - 1) // m) * m


def _dispnet_kernel(row_ref, out_ref):
    # row_ref: (1, W) lane-dense parameter row (VMEM-resident across grid steps,
    # index_map always returns (0, 0)); out_ref: (TILE_ROWS, W) output block.
    # Pure broadcast store — kernel is vst-slot / HBM-write bound.
    out_ref[...] = jnp.broadcast_to(row_ref[...], out_ref.shape)


def _dispnet_pallas(fixed_var: jax.Array, batch: int) -> jax.Array:
    dim_z = fixed_var.shape[1]
    dtype = fixed_var.dtype

    # --- Lane-densify the output -------------------------------------------
    if dim_z % _LANE == 0:
        # Already lane-dense.
        pack, width = 1, dim_z
        row = fixed_var
    elif _LANE % dim_z == 0:
        # Pack several logical rows into one 128-lane physical row.
        pack = _LANE // dim_z
        width = _LANE
        row = jnp.tile(fixed_var, (1, pack))
    else:
        # Awkward dim_z: pad the feature dim up to a multiple of 128.
        pack = 1
        width = _round_up(dim_z, _LANE)
        row = jnp.pad(fixed_var, ((0, 0), (0, width - dim_z)))

    batch_p = _round_up(batch, pack)
    rows = batch_p // pack  # physical slab rows needed

    # --- Batch-axis tiling ---------------------------------------------------
    # 512 x 128 x 4 B = 256 KiB per output block (x2 for double buffering)
    # fits every generation's scoped VMEM with large headroom (incl. v7x).
    tile_rows = 512 if rows >= 512 else _round_up(rows, _SUBLANE)
    rows_p = _round_up(rows, tile_rows)
    grid = (rows_p // tile_rows,)

    itemsize = jnp.dtype(dtype).itemsize
    cost = pl.CostEstimate(
        flops=0,
        transcendentals=0,
        bytes_accessed=rows_p * width * itemsize + width * itemsize,
    )

    slab = pl.pallas_call(
        _dispnet_kernel,
        out_shape=jax.ShapeDtypeStruct((rows_p, width), dtype),
        grid=grid,
        in_specs=[pl.BlockSpec((1, width), lambda i: (0, 0))],
        out_specs=pl.BlockSpec((tile_rows, width), lambda i: (i, 0)),
        compiler_params=pltpu.CompilerParams(
            dimension_semantics=("parallel",),
        ),
        cost_estimate=cost,
    )(row)

    # Undo packing / padding back to the logical (batch, dim_z) layout.
    dz = slab[:rows].reshape(batch_p, -1)[:batch, :dim_z]
    return dz


def dispnet_forward(fixed_var: jax.Array, mu: jax.Array, t: jax.Array,
                    *, force_pallas: bool = False) -> jax.Array:
    """Pallas/JAX implementation of DispNet.forward.

    Args:
      fixed_var: (1, dim_z) parameter.
      mu: (B, dim_z) — unused (kept to mirror the PyTorch signature).
      t:  (B, 1) or (B,) — only its leading dim is used.
      force_pallas: force the Pallas path even for tiny shapes (testing).
    Returns:
      (B, dim_z) array: fixed_var broadcast over the batch.
    """
    del mu  # unused by the PyTorch module as well
    batch = t.shape[0]
    dim_z = fixed_var.shape[1]
    out_bytes = batch * dim_z * jnp.dtype(fixed_var.dtype).itemsize

    if not force_pallas and out_bytes < _PALLAS_MIN_BYTES:
        # Tiny broadcast: pallas_call fixed overhead (~µs/step) dwarfs the
        # 1 KiB of work and blocks XLA from fusing into the consumer.
        return jnp.broadcast_to(fixed_var, (batch, dim_z))

    return _dispnet_pallas(fixed_var, batch)


if __name__ == "__main__":
    key = jax.random.PRNGKey(0)
    k_mu, k_t = jax.random.split(key)

    dim_z = 32   # config.dim_z
    batch = 8

    # Deterministic parameter init, matching nn.Parameter(-2.0 * torch.ones((1, dim_z)))
    fixed_var = -2.0 * jnp.ones((1, dim_z), dtype=jnp.float32)

    mu = jax.random.normal(k_mu, (batch, dim_z), dtype=jnp.float32)
    t = jax.random.normal(k_t, (batch, 1), dtype=jnp.float32)

    dz_ref = jnp.broadcast_to(fixed_var, (batch, dim_z))

    # Fast path (what real small-shape callers get): plain fusable broadcast.
    dz_fast = jax.block_until_ready(dispnet_forward(fixed_var, mu, t))
    assert dz_fast.shape == (batch, dim_z)
    assert jnp.allclose(dz_fast, dz_ref)

    # Exercise the lane-dense, batch-tiled Pallas path once as well.
    dz_pallas = jax.block_until_ready(
        dispnet_forward(fixed_var, mu, t, force_pallas=True))
    assert dz_pallas.shape == (batch, dim_z)
    assert jnp.allclose(dz_pallas, dz_ref)

    print("KERNEL_OK")
</pallas_src>

<mosaic_0001>
module attributes {stable_mosaic.version = 11 : i64} {
  func.func @_dispnet_kernel(%arg0: i32, %arg1: memref<1x128xf32, #tpu.memory_space<vmem>>, %arg2: memref<8x128xf32, #tpu.memory_space<vmem>>) attributes {dimension_semantics = [#tpu.dimension_semantics<parallel>], iteration_bounds = array<i64: 1>, scalar_prefetch = 0 : i64, scratch_operands = 0 : i64, tpu.core_type = #tpu.core_type<tc>, window_params = [{pipeline_mode = #tpu.pipeline_mode<synchronous>, transform_indices = @transform_0, window_bounds = array<i64: 1, 128>}, {transform_indices = @transform_1, window_bounds = array<i64: 8, 128>}]} {
    %c0 = arith.constant 0 : index
    %c0_0 = arith.constant 0 : index
    %0 = vector.load %arg1[%c0, %c0_0] : memref<1x128xf32, #tpu.memory_space<vmem>>, vector<1x128xf32>
    %1 = vector.shape_cast %0 : vector<1x128xf32> to vector<1x128xf32>
    %2 = vector.broadcast %1 : vector<1x128xf32> to vector<8x128xf32>
    %c0_1 = arith.constant 0 : index
    %c0_2 = arith.constant 0 : index
    %3 = vector.load %arg2[%c0_1, %c0_2] : memref<8x128xf32, #tpu.memory_space<vmem>>, vector<8x128xf32>
    tpu.vector_store %arg2[%c0_1, %c0_2], %2 {strides = array<i32>} : memref<8x128xf32, #tpu.memory_space<vmem>>, vector<8x128xf32>,
    return
  }
  func.func @transform_0(%arg0: i32) -> (i32, i32) {
    %c0_i32 = arith.constant 0 : i32
    %c0_i32_0 = arith.constant 0 : i32
    %c0_i32_1 = arith.constant 0 : i32
    return %c0_i32, %c0_i32_0 : i32, i32
  }
  func.func @transform_1(%arg0: i32) -> (i32, i32) {
    %c0_i32 = arith.constant 0 : i32
    %c0_i32_0 = arith.constant 0 : i32
    return %arg0, %c0_i32 : i32, i32
  }
}

</mosaic_0001>

<llo_original>
// kernel: tpu_custom_call.1
$region0: #{tpu_custom_call.1}
  #allocation0 [shape = 'u32[]', space=smem, size = 0x4, offset = 0x4, fixed_abs, tag = 'smem constant byte address 0x4 - core index']
  #allocation1 [shape = 'u32[144,128]{1,0:T(1,128)}', space=vmem, size = 0x12000, scoped, tag = 'internal scratch']
  %s0 = inlined_call_operand.hbm [shape: f32[1,128], index: 0, kind: input, shape index: {}]
  %s1 = inlined_call_operand.hbm [shape: f32[8,128], index: 1, kind: output, shape index: {}]
  %s2 = sld [smem:[#allocation0]]
  $region18: #{tpu_custom_call.1} parent=0
    _
  %s4 = ssub.s32 1, %s2
  %s5 = scalar_select 0, %s4, %s2
  $region1: #{tpu_custom_call.1} parent=0
    #allocation2 [shape = 'u8[512]{0}', space=vmem, size = 0x400, scoped, tag = 'input window, operand 0, single buffered']
    #allocation3 [shape = 's32[1]{0}', space=sflag, size = 0x4, scoped, tag = 'scoped memory for tpu_custom_call.1']
    #allocation4 [shape = 's32[1]{0}', space=sflag, size = 0x4, scoped, tag = 'scoped memory for tpu_custom_call.1']
    #allocation5 [shape = 'u8[4096]{0}', space=vmem, size = 0x1000, scoped, tag = 'output window, operand 0, single buffered']
    %6 = vsyncpa [#allocation3], 0
    %7 = vsyncpa [#allocation4], 0
    // Predicated region
    $region2: #{tpu_custom_call.1} parent=1 // pred_check
      _
    $region3: #{tpu_custom_call.1} parent=1 // pred_check_branch
      %9 = sbr.rel (0) target = $region5
    $region4: #{tpu_custom_call.1} parent=1 // pred_region
      %s11 = ssub.s32 16, 16
      %12 = vsyncadd [#allocation3], %s11
      %s14 = sshll.u32 [#allocation2], 4
      %s15 = int_to_ptr.vmem [resolvable:$true] %s14
      %17 = dma.hbm_to_vmem [thread:$0]  %s0, 16, %s15, [#allocation3]
    $region5: #{tpu_custom_call.1} parent=1 // pred_fallthru
      _
    // Predicated region
    $region6: #{tpu_custom_call.1} parent=1 // pred_check
      _
    $region7: #{tpu_custom_call.1} parent=1 // pred_check_branch
      %19 = sbr.rel (0) target = $region9
    $region8: #{tpu_custom_call.1} parent=1 // pred_region
      %20 = dma.done [#allocation3], 16
    $region9: #{tpu_custom_call.1} parent=1 // pred_fallthru
      _
    %v21 = vld [vmem:[#allocation2] sm:$0x1]
    %v23 = vlaneseq
    %v24 = vshrl.u32 %v23, 7
    %v25 = vsub.s32 0, %v24
    %v26 = vrot.slane %v21, %v25
    %28 = vst [vmem:[#allocation5] sm:$0xff] %v26
    // Predicated region
    $region10: #{tpu_custom_call.1} parent=1 // pred_check
      _
    $region11: #{tpu_custom_call.1} parent=1 // pred_check_branch
      %30 = sbr.rel (0) target = $region13
    $region12: #{tpu_custom_call.1} parent=1 // pred_region
      %s32 = ssub.s32 128, 128
      %33 = vsyncadd [#allocation4], %s32
      %s35 = sshll.u32 [#allocation5], 4
      %s36 = int_to_ptr.vmem [resolvable:$true] %s35
      %38 = dma.vmem_to_hbm [thread:$0]  %s36, 128, %s1, [#allocation4]
    $region13: #{tpu_custom_call.1} parent=1 // pred_fallthru
      _
    // Predicated region
    $region14: #{tpu_custom_call.1} parent=1 // pred_check
      _
    $region15: #{tpu_custom_call.1} parent=1 // pred_check_branch
      %40 = sbr.rel (0) target = $region17
    $region16: #{tpu_custom_call.1} parent=1 // pred_region
      %41 = dma.done [#allocation4], 128
    $region17: #{tpu_custom_call.1} parent=1 // pred_fallthru
      _
    %42 = vsyncpa [#allocation3], 1
    %43 = vsyncpa [#allocation4], 1

</llo_original>
